<compile_context>
chip_gen: v6e
topology: v6e:2x2x1
jax: 0.10.0
libtpu: 0.0.40
codegen_flags: <defaults>
</compile_context>

<pallas_src>
import functools

import jax
import jax.numpy as jnp
import numpy as np
from jax.experimental import pallas as pl
from jax.experimental.pallas import tpu as pltpu


def _binary_pack_kernel(x_ref, mid_ref, ys_ref, o_ref, *, n, inv_dis):
    """x_ref:(BR,128) queries; mid_ref:(n-1,) SMEM; ys_ref:(n,) SMEM; o_ref:(BR,128)."""
    x = x_ref[...]                                                 # (BR, 128) f32

    # cell index: i = clamp(trunc(x / dis + 1e-5), 0, n-2)
    # (trunc == floor for x >= 0, matching Python int(); clamped on both sides)
    i = (x * jnp.float32(inv_dis) + jnp.float32(1e-5)).astype(jnp.int32)
    i = jnp.clip(i, 0, n - 2)                                      # (BR, 128) i32

    # Per cell t: nearer endpoint is ys[t] if x < mid[t] else ys[t+1].
    # Fully unrolled over the tiny static table; table values are SMEM scalars,
    # so each step is a scalar-splat compare + select on the VPU (no gathers,
    # no division, no XLU reductions).
    out = jnp.zeros_like(x)
    for t in range(n - 1):
        near_t = jnp.where(x < mid_ref[t], ys_ref[t], ys_ref[t + 1])
        out = jnp.where(i == t, near_t, out)
    o_ref[...] = out


def binary_pack(b, xs, ys, *, block_rows=2048):
    """Pallas equivalent of BinaryPack.forward, vectorized over b[:, 0] -> (B,) f32.

    b:  (B, C) — only column 0 is used (batched version of the module's b[0]).
    xs: (n,)   sample x positions.
    ys: (n,)   sample y values (scalar per sample).
    """
    # TODO(synk): vector-valued ys (samples[i][1:] with >1 component) not handled;
    # ys is treated as one scalar per sample, matching the y.shape[0]==1 branch.
    xs = jnp.asarray(xs, jnp.float32)
    ys = jnp.asarray(ys, jnp.float32)
    n = int(xs.shape[0])
    dis = 1.0 / (n - 1)
    mid = 0.5 * (xs[:-1] + xs[1:])                    # (n-1,) decision midpoints

    x = b[:, 0].astype(jnp.float32)                   # (B,)
    B = x.shape[0]

    lanes = 128
    rows_needed = -(-B // lanes)                      # cdiv(B, 128)
    # block rows: multiple of 8 (sublane tile); shrink for small inputs
    br = min(block_rows, max(8, ((rows_needed + 7) // 8) * 8))
    rows = ((rows_needed + br - 1) // br) * br        # pad rows to multiple of br
    Bp = rows * lanes

    x_p = jnp.zeros((Bp,), jnp.float32).at[:B].set(x).reshape(rows, lanes)

    out = pl.pallas_call(
        functools.partial(_binary_pack_kernel, n=n, inv_dis=float(1.0 / dis)),
        out_shape=jax.ShapeDtypeStruct((rows, lanes), jnp.float32),
        grid_spec=pltpu.PrefetchScalarGridSpec(
            num_scalar_prefetch=0,
            grid=(rows // br,),
            in_specs=[
                pl.BlockSpec((br, lanes), lambda r: (r, 0)),               # queries
                pl.BlockSpec(memory_space=pltpu.MemorySpace.SMEM),         # mid table
                pl.BlockSpec(memory_space=pltpu.MemorySpace.SMEM),         # ys table
            ],
            out_specs=pl.BlockSpec((br, lanes), lambda r: (r, 0)),
        ),
        compiler_params=pltpu.CompilerParams(
            dimension_semantics=("parallel",)),
    )(x_p, mid, ys)

    return out.reshape(Bp)[:B]


def _ref_binary_pack(b_np, xs_np, ys_np):
    """Pure numpy reference matching the PyTorch module's forward (batched)."""
    n = xs_np.shape[0]
    dis = 1.0 / (n - 1)
    x = np.asarray(b_np[:, 0], np.float32)
    i = np.minimum((x / dis + 1e-5).astype(int), n - 2)
    i = np.maximum(i, 0)
    wa = x - xs_np[i]
    wb = xs_np[i + 1] - x
    return np.where(wa < wb, ys_np[i], ys_np[i + 1]).astype(np.float32)


if __name__ == "__main__":
    # Deterministic synthetic "samples": n (x, y) pairs, x equispaced on [0, 1].
    n = 9
    xs_np = np.linspace(0.0, 1.0, n).astype(np.float32)
    ys_np = (0.5 * np.sin(2.0 * np.pi * xs_np) + xs_np ** 2).astype(np.float32)
    xs_j = jnp.asarray(xs_np)
    ys_j = jnp.asarray(ys_np)

    # Small case consistent with the module: b is (B, C), values in [0, 1).
    key = jax.random.PRNGKey(0)
    b = jax.random.uniform(key, (8, 4), dtype=jnp.float32)
    out = jax.block_until_ready(binary_pack(b, xs_j, ys_j))
    ref = _ref_binary_pack(np.asarray(b), xs_np, ys_np)
    np.testing.assert_allclose(np.asarray(out), ref, rtol=1e-6, atol=1e-6)

    # Larger batch with a small block to exercise padding + multi-step grid.
    b2 = jax.random.uniform(jax.random.PRNGKey(1), (5000, 4), dtype=jnp.float32)
    out2 = jax.block_until_ready(binary_pack(b2, xs_j, ys_j, block_rows=8))
    ref2 = _ref_binary_pack(np.asarray(b2), xs_np, ys_np)
    np.testing.assert_allclose(np.asarray(out2), ref2, rtol=1e-6, atol=1e-6)

    print("KERNEL_OK")
</pallas_src>

<mosaic_0001>
module attributes {stable_mosaic.version = 11 : i64} {
  func.func @_binary_pack_kernel(%arg0: i32, %arg1: memref<8x128xf32, #tpu.memory_space<vmem>>, %arg2: memref<8xf32, #tpu.memory_space<smem>>, %arg3: memref<9xf32, #tpu.memory_space<smem>>, %arg4: memref<8x128xf32, #tpu.memory_space<vmem>>) attributes {dimension_semantics = [#tpu.dimension_semantics<parallel>], iteration_bounds = array<i64: 1>, scalar_prefetch = 0 : i64, scratch_operands = 0 : i64, tpu.core_type = #tpu.core_type<tc>, window_params = [{transform_indices = @transform_0, window_bounds = array<i64: 8, 128>}, {transform_indices = @transform_1, window_bounds = array<i64: 8>}, {transform_indices = @transform_2, window_bounds = array<i64: 9>}, {transform_indices = @transform_3, window_bounds = array<i64: 8, 128>}]} {
    %c0 = arith.constant 0 : index
    %c0_0 = arith.constant 0 : index
    %0 = vector.load %arg1[%c0, %c0_0] : memref<8x128xf32, #tpu.memory_space<vmem>>, vector<8x128xf32>
    %cst = arith.constant 8.000000e+00 : f32
    %1 = vector.broadcast %cst : f32 to vector<8x128xf32>
    %2 = arith.mulf %0, %1 : vector<8x128xf32>
    %cst_1 = arith.constant 9.99999974E-6 : f32
    %3 = vector.broadcast %cst_1 : f32 to vector<8x128xf32>
    %4 = arith.addf %2, %3 : vector<8x128xf32>
    %5 = arith.fptosi %4 : vector<8x128xf32> to vector<8x128xi32>
    %c0_i32 = arith.constant 0 : i32
    %c7_i32 = arith.constant 7 : i32
    %6 = vector.broadcast %c0_i32 : i32 to vector<8x128xi32>
    %7 = arith.maxsi %6, %5 : vector<8x128xi32>
    %8 = vector.broadcast %c7_i32 : i32 to vector<8x128xi32>
    %9 = arith.minsi %8, %7 : vector<8x128xi32>
    %cst_2 = arith.constant 0.000000e+00 : f32
    %10 = vector.broadcast %cst_2 : f32 to vector<8x128xf32>
    %c0_3 = arith.constant 0 : index
    %11 = memref.load %arg2[%c0_3] : memref<8xf32, #tpu.memory_space<smem>>
    %12 = vector.broadcast %11 : f32 to vector<8x128xf32>
    %13 = arith.cmpf olt, %0, %12 : vector<8x128xf32>
    %c0_4 = arith.constant 0 : index
    %14 = memref.load %arg3[%c0_4] : memref<9xf32, #tpu.memory_space<smem>>
    %c1 = arith.constant 1 : index
    %15 = memref.load %arg3[%c1] : memref<9xf32, #tpu.memory_space<smem>>
    %16 = vector.broadcast %14 : f32 to vector<8x128xf32>
    %17 = vector.broadcast %15 : f32 to vector<8x128xf32>
    %18 = arith.select %13, %16, %17 : vector<8x128xi1>, vector<8x128xf32>
    %c0_i32_5 = arith.constant 0 : i32
    %19 = vector.broadcast %c0_i32_5 : i32 to vector<8x128xi32>
    %20 = arith.cmpi eq, %9, %19 : vector<8x128xi32>
    %21 = arith.select %20, %18, %10 : vector<8x128xi1>, vector<8x128xf32>
    %c1_6 = arith.constant 1 : index
    %22 = memref.load %arg2[%c1_6] : memref<8xf32, #tpu.memory_space<smem>>
    %23 = vector.broadcast %22 : f32 to vector<8x128xf32>
    %24 = arith.cmpf olt, %0, %23 : vector<8x128xf32>
    %c1_7 = arith.constant 1 : index
    %25 = memref.load %arg3[%c1_7] : memref<9xf32, #tpu.memory_space<smem>>
    %c2 = arith.constant 2 : index
    %26 = memref.load %arg3[%c2] : memref<9xf32, #tpu.memory_space<smem>>
    %27 = vector.broadcast %25 : f32 to vector<8x128xf32>
    %28 = vector.broadcast %26 : f32 to vector<8x128xf32>
    %29 = arith.select %24, %27, %28 : vector<8x128xi1>, vector<8x128xf32>
    %c1_i32 = arith.constant 1 : i32
    %30 = vector.broadcast %c1_i32 : i32 to vector<8x128xi32>
    %31 = arith.cmpi eq, %9, %30 : vector<8x128xi32>
    %32 = arith.select %31, %29, %21 : vector<8x128xi1>, vector<8x128xf32>
    %c2_8 = arith.constant 2 : index
    %33 = memref.load %arg2[%c2_8] : memref<8xf32, #tpu.memory_space<smem>>
    %34 = vector.broadcast %33 : f32 to vector<8x128xf32>
    %35 = arith.cmpf olt, %0, %34 : vector<8x128xf32>
    %c2_9 = arith.constant 2 : index
    %36 = memref.load %arg3[%c2_9] : memref<9xf32, #tpu.memory_space<smem>>
    %c3 = arith.constant 3 : index
    %37 = memref.load %arg3[%c3] : memref<9xf32, #tpu.memory_space<smem>>
    %38 = vector.broadcast %36 : f32 to vector<8x128xf32>
    %39 = vector.broadcast %37 : f32 to vector<8x128xf32>
    %40 = arith.select %35, %38, %39 : vector<8x128xi1>, vector<8x128xf32>
    %c2_i32 = arith.constant 2 : i32
    %41 = vector.broadcast %c2_i32 : i32 to vector<8x128xi32>
    %42 = arith.cmpi eq, %9, %41 : vector<8x128xi32>
    %43 = arith.select %42, %40, %32 : vector<8x128xi1>, vector<8x128xf32>
    %c3_10 = arith.constant 3 : index
    %44 = memref.load %arg2[%c3_10] : memref<8xf32, #tpu.memory_space<smem>>
    %45 = vector.broadcast %44 : f32 to vector<8x128xf32>
    %46 = arith.cmpf olt, %0, %45 : vector<8x128xf32>
    %c3_11 = arith.constant 3 : index
    %47 = memref.load %arg3[%c3_11] : memref<9xf32, #tpu.memory_space<smem>>
    %c4 = arith.constant 4 : index
    %48 = memref.load %arg3[%c4] : memref<9xf32, #tpu.memory_space<smem>>
    %49 = vector.broadcast %47 : f32 to vector<8x128xf32>
    %50 = vector.broadcast %48 : f32 to vector<8x128xf32>
    %51 = arith.select %46, %49, %50 : vector<8x128xi1>, vector<8x128xf32>
    %c3_i32 = arith.constant 3 : i32
    %52 = vector.broadcast %c3_i32 : i32 to vector<8x128xi32>
    %53 = arith.cmpi eq, %9, %52 : vector<8x128xi32>
    %54 = arith.select %53, %51, %43 : vector<8x128xi1>, vector<8x128xf32>
    %c4_12 = arith.constant 4 : index
    %55 = memref.load %arg2[%c4_12] : memref<8xf32, #tpu.memory_space<smem>>
    %56 = vector.broadcast %55 : f32 to vector<8x128xf32>
    %57 = arith.cmpf olt, %0, %56 : vector<8x128xf32>
    %c4_13 = arith.constant 4 : index
    %58 = memref.load %arg3[%c4_13] : memref<9xf32, #tpu.memory_space<smem>>
    %c5 = arith.constant 5 : index
    %59 = memref.load %arg3[%c5] : memref<9xf32, #tpu.memory_space<smem>>
    %60 = vector.broadcast %58 : f32 to vector<8x128xf32>
    %61 = vector.broadcast %59 : f32 to vector<8x128xf32>
    %62 = arith.select %57, %60, %61 : vector<8x128xi1>, vector<8x128xf32>
    %c4_i32 = arith.constant 4 : i32
    %63 = vector.broadcast %c4_i32 : i32 to vector<8x128xi32>
    %64 = arith.cmpi eq, %9, %63 : vector<8x128xi32>
    %65 = arith.select %64, %62, %54 : vector<8x128xi1>, vector<8x128xf32>
    %c5_14 = arith.constant 5 : index
    %66 = memref.load %arg2[%c5_14] : memref<8xf32, #tpu.memory_space<smem>>
    %67 = vector.broadcast %66 : f32 to vector<8x128xf32>
    %68 = arith.cmpf olt, %0, %67 : vector<8x128xf32>
    %c5_15 = arith.constant 5 : index
    %69 = memref.load %arg3[%c5_15] : memref<9xf32, #tpu.memory_space<smem>>
    %c6 = arith.constant 6 : index
    %70 = memref.load %arg3[%c6] : memref<9xf32, #tpu.memory_space<smem>>
    %71 = vector.broadcast %69 : f32 to vector<8x128xf32>
    %72 = vector.broadcast %70 : f32 to vector<8x128xf32>
    %73 = arith.select %68, %71, %72 : vector<8x128xi1>, vector<8x128xf32>
    %c5_i32 = arith.constant 5 : i32
    %74 = vector.broadcast %c5_i32 : i32 to vector<8x128xi32>
    %75 = arith.cmpi eq, %9, %74 : vector<8x128xi32>
    %76 = arith.select %75, %73, %65 : vector<8x128xi1>, vector<8x128xf32>
    %c6_16 = arith.constant 6 : index
    %77 = memref.load %arg2[%c6_16] : memref<8xf32, #tpu.memory_space<smem>>
    %78 = vector.broadcast %77 : f32 to vector<8x128xf32>
    %79 = arith.cmpf olt, %0, %78 : vector<8x128xf32>
    %c6_17 = arith.constant 6 : index
    %80 = memref.load %arg3[%c6_17] : memref<9xf32, #tpu.memory_space<smem>>
    %c7 = arith.constant 7 : index
    %81 = memref.load %arg3[%c7] : memref<9xf32, #tpu.memory_space<smem>>
    %82 = vector.broadcast %80 : f32 to vector<8x128xf32>
    %83 = vector.broadcast %81 : f32 to vector<8x128xf32>
    %84 = arith.select %79, %82, %83 : vector<8x128xi1>, vector<8x128xf32>
    %c6_i32 = arith.constant 6 : i32
    %85 = vector.broadcast %c6_i32 : i32 to vector<8x128xi32>
    %86 = arith.cmpi eq, %9, %85 : vector<8x128xi32>
    %87 = arith.select %86, %84, %76 : vector<8x128xi1>, vector<8x128xf32>
    %c7_18 = arith.constant 7 : index
    %88 = memref.load %arg2[%c7_18] : memref<8xf32, #tpu.memory_space<smem>>
    %89 = vector.broadcast %88 : f32 to vector<8x128xf32>
    %90 = arith.cmpf olt, %0, %89 : vector<8x128xf32>
    %c7_19 = arith.constant 7 : index
    %91 = memref.load %arg3[%c7_19] : memref<9xf32, #tpu.memory_space<smem>>
    %c8 = arith.constant 8 : index
    %92 = memref.load %arg3[%c8] : memref<9xf32, #tpu.memory_space<smem>>
    %93 = vector.broadcast %91 : f32 to vector<8x128xf32>
    %94 = vector.broadcast %92 : f32 to vector<8x128xf32>
    %95 = arith.select %90, %93, %94 : vector<8x128xi1>, vector<8x128xf32>
    %c7_i32_20 = arith.constant 7 : i32
    %96 = vector.broadcast %c7_i32_20 : i32 to vector<8x128xi32>
    %97 = arith.cmpi eq, %9, %96 : vector<8x128xi32>
    %98 = arith.select %97, %95, %87 : vector<8x128xi1>, vector<8x128xf32>
    %c0_21 = arith.constant 0 : index
    %c0_22 = arith.constant 0 : index
    %99 = vector.load %arg4[%c0_21, %c0_22] : memref<8x128xf32, #tpu.memory_space<vmem>>, vector<8x128xf32>
    tpu.vector_store %arg4[%c0_21, %c0_22], %98 {strides = array<i32>} : memref<8x128xf32, #tpu.memory_space<vmem>>, vector<8x128xf32>,
    return
  }
  func.func @transform_0(%arg0: i32) -> (i32, i32) {
    %c0_i32 = arith.constant 0 : i32
    %c0_i32_0 = arith.constant 0 : i32
    return %arg0, %c0_i32 : i32, i32
  }
  func.func @transform_1(%arg0: i32) -> i32 {
    %c0_i32 = arith.constant 0 : i32
    %c0_i32_0 = arith.constant 0 : i32
    return %c0_i32 : i32
  }
  func.func @transform_2(%arg0: i32) -> i32 {
    %c0_i32 = arith.constant 0 : i32
    %c0_i32_0 = arith.constant 0 : i32
    return %c0_i32 : i32
  }
  func.func @transform_3(%arg0: i32) -> (i32, i32) {
    %c0_i32 = arith.constant 0 : i32
    %c0_i32_0 = arith.constant 0 : i32
    return %arg0, %c0_i32 : i32, i32
  }
}

</mosaic_0001>

<llo_original>
// kernel: tpu_custom_call.1
$region0: #{tpu_custom_call.1}
  #allocation0 [shape = 'u32[]', space=smem, size = 0x4, offset = 0x4, fixed_abs, tag = 'smem constant byte address 0x4 - core index']
  #allocation1 [shape = 'u32[144,128]{1,0:T(1,128)}', space=vmem, size = 0x12000, scoped, tag = 'internal scratch']
  %s0 = inlined_call_operand.hbm [shape: f32[8,128], index: 0, kind: input, shape index: {}]
  %s1 = inlined_call_operand.vmem [shape: f32[8], index: 1, kind: input, shape index: {}]
  %s2 = inlined_call_operand.vmem [shape: f32[9], index: 2, kind: input, shape index: {}]
  %s3 = inlined_call_operand.hbm [shape: f32[8,128], index: 3, kind: output, shape index: {}]
  %s4 = sld [smem:[#allocation0]]
  $region34: #{tpu_custom_call.1} parent=0
    _
  %s6 = ssub.s32 1, %s4
  %s7 = scalar_select 0, %s6, %s4
  $region1: #{tpu_custom_call.1} parent=0
    #allocation2 [shape = 'u8[4096]{0}', space=vmem, size = 0x1000, scoped, tag = 'input window, operand 0, single buffered']
    #allocation3 [shape = 's32[1]{0}', space=sflag, size = 0x4, scoped, tag = 'scoped memory for tpu_custom_call.1']
    #allocation4 [shape = 's32[1]{0}', space=sflag, size = 0x4, scoped, tag = 'scoped memory for tpu_custom_call.1']
    #allocation5 [shape = 's32[1]{0}', space=sflag, size = 0x4, scoped, tag = 'scoped memory for tpu_custom_call.1']
    #allocation6 [shape = 'u8[512]{0}', space=smem, size = 0x200, scoped, tag = 'input window, operand 1, single buffered']
    #allocation7 [shape = 'u8[512]{0}', space=smem, size = 0x200, scoped, tag = 'input window, operand 2, single buffered']
    #allocation8 [shape = 's32[1]{0}', space=sflag, size = 0x4, scoped, tag = 'scoped memory for tpu_custom_call.1']
    #allocation9 [shape = 'u8[4096]{0}', space=vmem, size = 0x1000, scoped, tag = 'output window, operand 0, single buffered']
    %8 = vsyncpa [#allocation3], 0
    %9 = vsyncpa [#allocation5], 0
    %10 = vsyncpa [#allocation8], 0
    %11 = vsyncpa [#allocation4], 0
    // Predicated region
    $region2: #{tpu_custom_call.1} parent=1 // pred_check
      _
    $region3: #{tpu_custom_call.1} parent=1 // pred_check_branch
      %13 = sbr.rel (0) target = $region5
    $region4: #{tpu_custom_call.1} parent=1 // pred_region
      %s15 = ssub.s32 128, 128
      %16 = vsyncadd [#allocation3], %s15
      %s18 = sshll.u32 [#allocation2], 4
      %s19 = int_to_ptr.vmem [resolvable:$true] %s18
      %21 = dma.hbm_to_vmem [thread:$0]  %s0, 128, %s19, [#allocation3]
    $region5: #{tpu_custom_call.1} parent=1 // pred_fallthru
      _
    // Predicated region
    $region6: #{tpu_custom_call.1} parent=1 // pred_check
      _
    $region7: #{tpu_custom_call.1} parent=1 // pred_check_branch
      %23 = sbr.rel (0) target = $region9
    $region8: #{tpu_custom_call.1} parent=1 // pred_region
      %s25 = ssub.s32 16, 16
      %26 = vsyncadd [#allocation5], %s25
      %s28 = sshll.u32 %s1, 4
      %s29 = int_to_ptr.vmem [resolvable:$true] %s28
      %31 = dma.vmem_to_smem %s29, 16, [#allocation6], [#allocation5]
    $region9: #{tpu_custom_call.1} parent=1 // pred_fallthru
      _
    // Predicated region
    $region10: #{tpu_custom_call.1} parent=1 // pred_check
      _
    $region11: #{tpu_custom_call.1} parent=1 // pred_check_branch
      %33 = sbr.rel (0) target = $region13
    $region12: #{tpu_custom_call.1} parent=1 // pred_region
      %s35 = ssub.s32 16, 16
      %36 = vsyncadd [#allocation8], %s35
      %s38 = sshll.u32 %s2, 4
      %s39 = int_to_ptr.vmem [resolvable:$true] %s38
      %41 = dma.vmem_to_smem %s39, 16, [#allocation7], [#allocation8]
    $region13: #{tpu_custom_call.1} parent=1 // pred_fallthru
      _
    // Predicated region
    $region14: #{tpu_custom_call.1} parent=1 // pred_check
      _
    $region15: #{tpu_custom_call.1} parent=1 // pred_check_branch
      %43 = sbr.rel (0) target = $region17
    $region16: #{tpu_custom_call.1} parent=1 // pred_region
      %44 = dma.done [#allocation3], 128
    $region17: #{tpu_custom_call.1} parent=1 // pred_fallthru
      _
    // Predicated region
    $region18: #{tpu_custom_call.1} parent=1 // pred_check
      _
    $region19: #{tpu_custom_call.1} parent=1 // pred_check_branch
      %46 = sbr.rel (0) target = $region21
    $region20: #{tpu_custom_call.1} parent=1 // pred_region
      %47 = dma.done [#allocation5], 16
    $region21: #{tpu_custom_call.1} parent=1 // pred_fallthru
      _
    // Predicated region
    $region22: #{tpu_custom_call.1} parent=1 // pred_check
      _
    $region23: #{tpu_custom_call.1} parent=1 // pred_check_branch
      %49 = sbr.rel (0) target = $region25
    $region24: #{tpu_custom_call.1} parent=1 // pred_region
      %50 = dma.done [#allocation8], 16
    $region25: #{tpu_custom_call.1} parent=1 // pred_fallthru
      _
    %51 = sfence
    %v52 = vld [vmem:[#allocation2] sm:$0xff]
    %v53 = vmul.f32 %v52, 8.0
    %v54 = vadd.f32 %v53, 1e-05
    %v55 = vcvt.f32.s32.to.zero.pseudo %v54
    %vm56 = vcmp.gt.s32.totalorder %v55, 0
    %v57 = vsel %vm56, %v55, 0
    %vm58 = vcmp.lt.s32.totalorder %v57, 7
    %v59 = vsel %vm58, %v57, 7
    %s60 = sld [smem:[#allocation6]]
    %v61 = vstv %s60
    %vm62 = vcmp.lt.f32.partialorder %v52, %v61
    %s63 = sld [smem:[#allocation7]]
    %s64 = sld [smem:[#allocation7 + $0x1]]
    %v65 = vstv %s63
    %v66 = vstv %s64
    %v67 = vsel %vm62, %v65, %v66
    %vm68 = vcmp.eq.s32.totalorder %v59, 0
    %v69 = vsel %vm68, %v67, 0.0
    %s70 = sld [smem:[#allocation6 + $0x1]]
    %v71 = vstv %s70
    %vm72 = vcmp.lt.f32.partialorder %v52, %v71
    %s73 = sld [smem:[#allocation7 + $0x2]]
    %v74 = vstv %s73
    %v75 = vsel %vm72, %v66, %v74
    %vm76 = vcmp.eq.s32.totalorder %v59, 1
    %v77 = vsel %vm76, %v75, %v69
    %s78 = sld [smem:[#allocation6 + $0x2]]
    %v79 = vstv %s78
    %vm80 = vcmp.lt.f32.partialorder %v52, %v79
    %s81 = sld [smem:[#allocation7 + $0x3]]
    %v82 = vstv %s81
    %v83 = vsel %vm80, %v74, %v82
    %vm84 = vcmp.eq.s32.totalorder %v59, 2
    %v85 = vsel %vm84, %v83, %v77
    %s86 = sld [smem:[#allocation6 + $0x3]]
    %v87 = vstv %s86
    %vm88 = vcmp.lt.f32.partialorder %v52, %v87
    %s89 = sld [smem:[#allocation7 + $0x4]]
    %v90 = vstv %s89
    %v91 = vsel %vm88, %v82, %v90
    %vm92 = vcmp.eq.s32.totalorder %v59, 3
    %v93 = vsel %vm92, %v91, %v85
    %s94 = sld [smem:[#allocation6 + $0x4]]
    %v95 = vstv %s94
    %vm96 = vcmp.lt.f32.partialorder %v52, %v95
    %s97 = sld [smem:[#allocation7 + $0x5]]
    %v98 = vstv %s97
    %v99 = vsel %vm96, %v90, %v98
    %vm100 = vcmp.eq.s32.totalorder %v59, 4
    %v101 = vsel %vm100, %v99, %v93
    %s102 = sld [smem:[#allocation6 + $0x5]]
    %v103 = vstv %s102
    %vm104 = vcmp.lt.f32.partialorder %v52, %v103
    %s105 = sld [smem:[#allocation7 + $0x6]]
    %v106 = vstv %s105
    %v107 = vsel %vm104, %v98, %v106
    %vm108 = vcmp.eq.s32.totalorder %v59, 5
    %v109 = vsel %vm108, %v107, %v101
    %s110 = sld [smem:[#allocation6 + $0x6]]
    %v111 = vstv %s110
    %vm112 = vcmp.lt.f32.partialorder %v52, %v111
    %s113 = sld [smem:[#allocation7 + $0x7]]
    %v114 = vstv %s113
    %v115 = vsel %vm112, %v106, %v114
    %vm116 = vcmp.eq.s32.totalorder %v59, 6
    %v117 = vsel %vm116, %v115, %v109
    %s118 = sld [smem:[#allocation6 + $0x7]]
    %v119 = vstv %s118
    %vm120 = vcmp.lt.f32.partialorder %v52, %v119
    %s121 = sld [smem:[#allocation7 + $0x8]]
    %v122 = vstv %s121
    %v123 = vsel %vm120, %v114, %v122
    %vm124 = vcmp.eq.s32.totalorder %v59, 7
    %v125 = vsel %vm124, %v123, %v117
    %126 = vst [vmem:[#allocation9] sm:$0xff] %v125
    // Predicated region
    $region26: #{tpu_custom_call.1} parent=1 // pred_check
      _
    $region27: #{tpu_custom_call.1} parent=1 // pred_check_branch
      %128 = sbr.rel (0) target = $region29
    $region28: #{tpu_custom_call.1} parent=1 // pred_region
      %s130 = ssub.s32 128, 128
      %131 = vsyncadd [#allocation4], %s130
      %s133 = sshll.u32 [#allocation9], 4
      %s134 = int_to_ptr.vmem [resolvable:$true] %s133
      %136 = dma.vmem_to_hbm [thread:$0]  %s134, 128, %s3, [#allocation4]
    $region29: #{tpu_custom_call.1} parent=1 // pred_fallthru
      _
    // Predicated region
    $region30: #{tpu_custom_call.1} parent=1 // pred_check
      _
    $region31: #{tpu_custom_call.1} parent=1 // pred_check_branch
      %138 = sbr.rel (0) target = $region33
    $region32: #{tpu_custom_call.1} parent=1 // pred_region
      %139 = dma.done [#allocation4], 128
    $region33: #{tpu_custom_call.1} parent=1 // pred_fallthru
      _
    %140 = vsyncpa [#allocation3], 1
    %141 = vsyncpa [#allocation4], 1
    %142 = vsyncpa [#allocation5], 1
    %143 = vsyncpa [#allocation8], 1

</llo_original>
